<compile_context>
chip_gen: v5e
topology: v5e:2x2
jax: 0.10.0
libtpu: 0.0.40
codegen_flags: <defaults>
</compile_context>

<pallas_src>
import functools

import jax
import jax.numpy as jnp
import numpy as np
from jax.experimental import pallas as pl
from jax.experimental.pallas import tpu as pltpu


def _round_up(n, m):
    return ((n + m - 1) // m) * m


def _sublane_multiple(dtype):
    itemsize = jnp.dtype(dtype).itemsize
    return {4: 8, 2: 16, 1: 32}.get(itemsize, 8)


def _vmem_capacity_bytes():
    """Trace-time VMEM query; conservative (v7x) fallback if unavailable."""
    try:
        info = pltpu.get_tpu_info()
        cap = getattr(info, "vmem_capacity_bytes", None)
        if cap:
            return int(cap)
    except Exception:
        pass
    return 64 * 1024 * 1024


# ----------------------------------------------------------------------------
# Kernel 1: embedding gather + SiLU + linear  ->  (B, 3C) modulation
# ----------------------------------------------------------------------------
_TABLE_VMEM_BYTES_MAX = 2 * 1024 * 1024


def _modulation_kernel(labels_ref, table_ref, w_ref, b_ref, out_ref, *scratch,
                       table_in_vmem):
    """out = SiLU(emb_table[labels]) @ W + b', computed once for the batch."""
    emb_vmem = scratch[0]
    batch = emb_vmem.shape[0]

    if table_in_vmem:
        # Small table: resident in VMEM, dynamic row loads (no DMA plumbing).
        for i in range(batch):  # batch is a static Python int -> unrolled
            emb_vmem[pl.ds(i, 1), :] = table_ref[pl.ds(labels_ref[i], 1), :]
    else:
        # Large table: stays in HBM; DMA-gather only the B needed rows.
        sems = scratch[1]
        copies = []
        for i in range(batch):
            cp = pltpu.make_async_copy(
                table_ref.at[pl.ds(labels_ref[i], 1), :],
                emb_vmem.at[pl.ds(i, 1), :],
                sems.at[i],
            )
            cp.start()
            copies.append(cp)
        for cp in copies:
            cp.wait()

    e = emb_vmem[...].astype(jnp.float32)            # (B, D), f32 math
    silu = e * (1.0 / (1.0 + jnp.exp(-e)))           # SiLU before the linear
    # Feed the MXU operands in the weight dtype (bf16 stays bf16), f32 acc.
    y = jnp.dot(silu.astype(w_ref.dtype), w_ref[...],
                preferred_element_type=jnp.float32)  # (B, 3C)
    out_ref[...] = y + b_ref[...].astype(jnp.float32)


def _modulation(class_labels, emb_table, w, bias_row):
    """Returns the (B, 3C) float32 modulation tensor (scale chunk has +1)."""
    batch = class_labels.shape[0]
    num_emb, emb_dim = emb_table.shape
    out_dim = w.shape[1]

    table_in_vmem = (num_emb * emb_dim * emb_table.dtype.itemsize
                     <= _TABLE_VMEM_BYTES_MAX)
    table_space = pltpu.MemorySpace.VMEM if table_in_vmem else pl.ANY
    scratch = [pltpu.VMEM((batch, emb_dim), emb_table.dtype)]
    if not table_in_vmem:
        scratch.append(pltpu.SemaphoreType.DMA((batch,)))

    call = pl.pallas_call(
        functools.partial(_modulation_kernel, table_in_vmem=table_in_vmem),
        out_shape=jax.ShapeDtypeStruct((batch, out_dim), jnp.float32),
        in_specs=[
            pl.BlockSpec(memory_space=pltpu.MemorySpace.SMEM),   # class labels
            pl.BlockSpec(memory_space=table_space),              # emb table
            pl.BlockSpec(memory_space=pltpu.MemorySpace.VMEM),   # W (D, 3C)
            pl.BlockSpec(memory_space=pltpu.MemorySpace.VMEM),   # bias (1, 3C)
        ],
        out_specs=pl.BlockSpec(memory_space=pltpu.MemorySpace.VMEM),
        scratch_shapes=scratch,
    )
    return call(class_labels.astype(jnp.int32), emb_table, w, bias_row)


# ----------------------------------------------------------------------------
# Kernel 2: streaming LayerNorm (no affine) + adaLN modulation over x
# ----------------------------------------------------------------------------
def _adaln_kernel(x_ref, shift_ref, scale1_ref, o_ref, *, eps, chunk):
    # x_ref: (1, TILE, C); shift/scale1: (1, 1, C) for this batch element.
    tile = x_ref.shape[1]
    scale1 = scale1_ref[0].astype(jnp.float32)        # (1, C), VMEM resident
    shift = shift_ref[0].astype(jnp.float32)          # (1, C)

    def process(r0, size):
        x = x_ref[0, pl.ds(r0, size), :].astype(jnp.float32)   # (size, C)
        # Two-pass moments (torch-LayerNorm numerics); rsqrt goes to the EUP.
        mean = jnp.mean(x, axis=-1, keepdims=True)
        xc = x - mean
        var = jnp.mean(xc * xc, axis=-1, keepdims=True)
        x_hat = xc * jax.lax.rsqrt(var + eps)
        o_ref[0, pl.ds(r0, size), :] = (x_hat * scale1 + shift).astype(
            o_ref.dtype)

    # Bounded vreg live ranges: march over the block in sub-chunks.
    n_full = tile // chunk
    if n_full > 0:
        def body(c, carry):
            process(pl.multiple_of(c * chunk, chunk), chunk)
            return carry
        jax.lax.fori_loop(0, n_full, body, 0, unroll=True)
    rem = tile - n_full * chunk
    if rem:
        process(n_full * chunk, rem)


def _choose_row_tile(rows, channels, itemsize, sublane):
    """Largest lane-dense row tile whose double-buffered in+out blocks fit
    this generation's VMEM (128 MiB on v5e/v6e, 64 MiB per TC on v7x)."""
    cap = _vmem_capacity_bytes()
    if cap >= 96 * 1024 * 1024:            # v5e / v6e: 128 MiB physical
        budget = 28 * 1024 * 1024          # bytes for 2 bufs x (in + out)
        vmem_limit = 64 * 1024 * 1024
    else:                                  # v7x: 64 MiB per TensorCore
        budget = 14 * 1024 * 1024
        vmem_limit = 32 * 1024 * 1024
    tile = 1024                            # measured sweet spot is 512-1024
    while tile > sublane and 4 * tile * channels * itemsize > budget:
        tile //= 2
    tile = min(tile, _round_up(rows, sublane))   # don't exceed actual rows
    tile = max(sublane, _round_up(tile, sublane))
    return tile, vmem_limit


def _layernorm_modulate(x_rows, shift, scale1, eps):
    """x_rows: (B, R, C); shift/scale1: (B, 1, C) f32.  Returns (B, R, C)."""
    batch, rows, channels = x_rows.shape
    sublane = _sublane_multiple(x_rows.dtype)
    tile, vmem_limit = _choose_row_tile(rows, channels,
                                        x_rows.dtype.itemsize, sublane)
    n_tiles = pl.cdiv(rows, tile)          # partial last tile handled by Pallas
    # ~32K-element sub-chunks keep per-chunk arrays around 32 vregs (f32).
    chunk = min(tile, max(sublane, _round_up(max(32768 // channels, 1),
                                             sublane)))

    return pl.pallas_call(
        functools.partial(_adaln_kernel, eps=eps, chunk=chunk),
        out_shape=jax.ShapeDtypeStruct((batch, rows, channels), x_rows.dtype),
        grid=(batch, n_tiles),
        in_specs=[
            pl.BlockSpec((1, tile, channels), lambda b, r: (b, r, 0)),
            # Modulation rows: same block index for every row tile -> stays
            # VMEM resident across the streaming axis (no re-DMA/recompute).
            pl.BlockSpec((1, 1, channels), lambda b, r: (b, 0, 0)),
            pl.BlockSpec((1, 1, channels), lambda b, r: (b, 0, 0)),
        ],
        out_specs=pl.BlockSpec((1, tile, channels), lambda b, r: (b, r, 0)),
        compiler_params=pltpu.CompilerParams(
            # Pure streaming op, no cross-iteration state: both axes parallel.
            dimension_semantics=("parallel", "parallel"),
            vmem_limit_bytes=vmem_limit,
        ),
    )(x_rows, shift, scale1)


# ----------------------------------------------------------------------------
# Public forward: adaLN-Zero
# ----------------------------------------------------------------------------
def ada_layer_norm_zero(x, class_labels, emb_table, w, b, *, eps=1e-6):
    """adaLN-Zero forward pass.

    Args:
      x:            (B, H, W, C) channels-last, as the PyTorch module requires.
      class_labels: (B,) integer class ids.
      emb_table:    (num_embeddings, embedding_dim) embedding weights.
      w:            (embedding_dim, 3*C) linear weight (= torch weight.T).
      b:            (3*C,) linear bias.
    Returns:
      (x_out of shape (B, H, W, C), gate of shape (B, C, 1, 1)).
    """
    batch, height, width, channels = x.shape

    # Fold the "+1" of (1 + scale) into the linear bias, so kernel 2 computes
    # x_hat * scale1 + shift with no per-tile add (tiny wrapper op on (3C,)).
    plus_one = jnp.concatenate([
        jnp.zeros((channels,), jnp.float32),
        jnp.ones((channels,), jnp.float32),
        jnp.zeros((channels,), jnp.float32)])
    bias_row = (b.astype(jnp.float32) + plus_one).reshape(1, 3 * channels)

    mod = _modulation(class_labels, emb_table, w, bias_row)    # (B, 3C) f32
    shift = mod[:, :channels].reshape(batch, 1, channels)
    scale1 = mod[:, channels:2 * channels].reshape(batch, 1, channels)
    gate = mod[:, 2 * channels:]                               # (B, C)

    x_rows = x.reshape(batch, height * width, channels)
    out = _layernorm_modulate(x_rows, shift, scale1, eps)
    out = out.reshape(batch, height, width, channels)

    # Free layout plumbing outside the kernel (never a size-1 lane store).
    gate = gate.astype(x.dtype).reshape(batch, channels, 1, 1)
    return out, gate


# ----------------------------------------------------------------------------
# Pure-JAX reference for validation
# ----------------------------------------------------------------------------
def _reference(x, class_labels, emb_table, w, b, eps=1e-6):
    e = emb_table[class_labels].astype(jnp.float32)
    e = e * jax.nn.sigmoid(e)
    mod = e @ w.astype(jnp.float32) + b.astype(jnp.float32)
    c = x.shape[-1]
    shift, scale, gate = mod[:, :c], mod[:, c:2 * c], mod[:, 2 * c:]
    xf = x.astype(jnp.float32)
    mean = xf.mean(-1, keepdims=True)
    var = ((xf - mean) ** 2).mean(-1, keepdims=True)
    x_hat = (xf - mean) * jax.lax.rsqrt(var + eps)
    out = x_hat * (1.0 + scale[:, None, None, :]) + shift[:, None, None, :]
    return out.astype(x.dtype), gate.astype(x.dtype)[:, :, None, None]


if __name__ == "__main__":
    key = jax.random.PRNGKey(0)
    k1, k2, k3, k4, k5 = jax.random.split(key, 5)

    batch, height, width, channels = 2, 16, 16, 128
    embedding_dim, num_embeddings = 32, 8

    x = jax.random.normal(k1, (batch, height, width, channels),
                          dtype=jnp.float32)
    class_labels = jax.random.randint(k2, (batch,), 0, num_embeddings,
                                      dtype=jnp.int32)
    emb_table = 0.5 * jax.random.normal(
        k3, (num_embeddings, embedding_dim), dtype=jnp.float32)
    # nn.Linear(embedding_dim, 3*C): stored here as (D, 3C) = torch weight.T
    w = 0.02 * jax.random.normal(
        k4, (embedding_dim, 3 * channels), dtype=jnp.float32)
    b = 0.02 * jax.random.normal(k5, (3 * channels,), dtype=jnp.float32)

    out, gate = jax.jit(ada_layer_norm_zero)(x, class_labels, emb_table, w, b)
    out = jax.block_until_ready(out)
    gate = jax.block_until_ready(gate)

    ref_out, ref_gate = _reference(x, class_labels, emb_table, w, b)
    assert out.shape == (batch, height, width, channels)
    assert gate.shape == (batch, channels, 1, 1)
    np.testing.assert_allclose(np.asarray(out), np.asarray(ref_out),
                               rtol=2e-3, atol=2e-3)
    np.testing.assert_allclose(np.asarray(gate), np.asarray(ref_gate),
                               rtol=2e-3, atol=2e-3)
    print("KERNEL_OK")
</pallas_src>

<mosaic_0001>
module attributes {stable_mosaic.version = 11 : i64} {
  func.func @_modulation_kernel(%arg0: memref<2xi32, #tpu.memory_space<smem>>, %arg1: memref<8x32xf32, #tpu.memory_space<vmem>>, %arg2: memref<32x384xf32, #tpu.memory_space<vmem>>, %arg3: memref<1x384xf32, #tpu.memory_space<vmem>>, %arg4: memref<2x384xf32, #tpu.memory_space<vmem>>, %arg5: memref<2x32xf32, #tpu.memory_space<vmem>>) attributes {dimension_semantics = [], scalar_prefetch = 0 : i64, scratch_operands = 1 : i64, tpu.core_type = #tpu.core_type<tc>} {
    %c0 = arith.constant 0 : index
    %0 = memref.load %arg0[%c0] : memref<2xi32, #tpu.memory_space<smem>>
    %1 = arith.index_cast %0 : i32 to index
    %c0_0 = arith.constant 0 : index
    %2 = vector.load %arg1[%1, %c0_0] : memref<8x32xf32, #tpu.memory_space<vmem>>, vector<1x32xf32>
    %c0_1 = arith.constant 0 : index
    %c0_2 = arith.constant 0 : index
    %3 = vector.load %arg5[%c0_1, %c0_2] : memref<2x32xf32, #tpu.memory_space<vmem>>, vector<1x32xf32>
    tpu.vector_store %arg5[%c0_1, %c0_2], %2 {strides = array<i32>} : memref<2x32xf32, #tpu.memory_space<vmem>>, vector<1x32xf32>,
    %c1 = arith.constant 1 : index
    %4 = memref.load %arg0[%c1] : memref<2xi32, #tpu.memory_space<smem>>
    %5 = arith.index_cast %4 : i32 to index
    %c0_3 = arith.constant 0 : index
    %6 = vector.load %arg1[%5, %c0_3] : memref<8x32xf32, #tpu.memory_space<vmem>>, vector<1x32xf32>
    %c1_4 = arith.constant 1 : index
    %c0_5 = arith.constant 0 : index
    %7 = vector.load %arg5[%c1_4, %c0_5] : memref<2x32xf32, #tpu.memory_space<vmem>>, vector<1x32xf32>
    tpu.vector_store %arg5[%c1_4, %c0_5], %6 {strides = array<i32>} : memref<2x32xf32, #tpu.memory_space<vmem>>, vector<1x32xf32>,
    %c0_6 = arith.constant 0 : index
    %c0_7 = arith.constant 0 : index
    %8 = vector.load %arg5[%c0_6, %c0_7] : memref<2x32xf32, #tpu.memory_space<vmem>>, vector<2x32xf32>
    %cst = arith.constant 0.000000e+00 : f32
    %9 = vector.broadcast %cst : f32 to vector<2x32xf32>
    %10 = arith.subf %9, %8 : vector<2x32xf32>
    %11 = math.exp %10 : vector<2x32xf32>
    %cst_8 = arith.constant 1.000000e+00 : f32
    %12 = vector.broadcast %cst_8 : f32 to vector<2x32xf32>
    %13 = arith.addf %12, %11 : vector<2x32xf32>
    %cst_9 = arith.constant 1.000000e+00 : f32
    %14 = vector.broadcast %cst_9 : f32 to vector<2x32xf32>
    %15 = arith.divf %14, %13 : vector<2x32xf32>
    %16 = arith.mulf %8, %15 : vector<2x32xf32>
    %c0_10 = arith.constant 0 : index
    %c0_11 = arith.constant 0 : index
    %17 = vector.load %arg2[%c0_10, %c0_11] : memref<32x384xf32, #tpu.memory_space<vmem>>, vector<32x384xf32>
    %cst_12 = arith.constant dense<0.000000e+00> : vector<2x384xf32>
    %18 = tpu.matmul %16, %17, %cst_12 {dimension_numbers = #tpu.dot_dimension_numbers<[1], [0], [0], [1], [0, 0, 1, 1], [], []>} : vector<2x32xf32>, vector<32x384xf32>, vector<2x384xf32> -> vector<2x384xf32>
    %c0_13 = arith.constant 0 : index
    %c0_14 = arith.constant 0 : index
    %19 = vector.load %arg3[%c0_13, %c0_14] : memref<1x384xf32, #tpu.memory_space<vmem>>, vector<1x384xf32>
    %20 = vector.broadcast %19 : vector<1x384xf32> to vector<2x384xf32>
    %21 = arith.addf %18, %20 : vector<2x384xf32>
    %c0_15 = arith.constant 0 : index
    %c0_16 = arith.constant 0 : index
    %22 = vector.load %arg4[%c0_15, %c0_16] : memref<2x384xf32, #tpu.memory_space<vmem>>, vector<2x384xf32>
    tpu.vector_store %arg4[%c0_15, %c0_16], %21 {strides = array<i32>} : memref<2x384xf32, #tpu.memory_space<vmem>>, vector<2x384xf32>,
    return
  }
}

module attributes {stable_mosaic.version = 11 : i64} {
  func.func @_adaln_kernel(%arg0: i32, %arg1: i32, %arg2: memref<1x256x128xf32, #tpu.memory_space<vmem>>, %arg3: memref<1x1x128xf32, #tpu.memory_space<vmem>>, %arg4: memref<1x1x128xf32, #tpu.memory_space<vmem>>, %arg5: memref<1x256x128xf32, #tpu.memory_space<vmem>>) attributes {dimension_semantics = [#tpu.dimension_semantics<parallel>, #tpu.dimension_semantics<parallel>], iteration_bounds = array<i64: 2, 1>, scalar_prefetch = 0 : i64, scratch_operands = 0 : i64, tpu.core_type = #tpu.core_type<tc>, window_params = [{transform_indices = @transform_0, window_bounds = array<i64: 1, 256, 128>}, {transform_indices = @transform_1, window_bounds = array<i64: 1, 1, 128>}, {transform_indices = @transform_2, window_bounds = array<i64: 1, 1, 128>}, {transform_indices = @transform_3, window_bounds = array<i64: 1, 256, 128>}]} {
    %c0 = arith.constant 0 : index
    %c0_0 = arith.constant 0 : index
    %c0_1 = arith.constant 0 : index
    %0 = vector.load %arg4[%c0, %c0_0, %c0_1] : memref<1x1x128xf32, #tpu.memory_space<vmem>>, vector<1x1x128xf32>
    %1 = vector.shape_cast %0 : vector<1x1x128xf32> to vector<1x128xf32>
    %c0_2 = arith.constant 0 : index
    %c0_3 = arith.constant 0 : index
    %c0_4 = arith.constant 0 : index
    %2 = vector.load %arg3[%c0_2, %c0_3, %c0_4] : memref<1x1x128xf32, #tpu.memory_space<vmem>>, vector<1x1x128xf32>
    %3 = vector.shape_cast %2 : vector<1x1x128xf32> to vector<1x128xf32>
    %c0_i32 = arith.constant 0 : i32
    %c256_i32 = arith.constant 256 : i32
    %4 = arith.muli %c0_i32, %c256_i32 : i32
    %5 = tpu.assume_multiple %4, 256 : i32
    %c0_5 = arith.constant 0 : index
    %6 = arith.index_cast %5 : i32 to index
    %c0_6 = arith.constant 0 : index
    %7 = vector.load %arg2[%c0_5, %6, %c0_6] : memref<1x256x128xf32, #tpu.memory_space<vmem>>, vector<1x256x128xf32>
    %8 = vector.shape_cast %7 : vector<1x256x128xf32> to vector<256x128xf32>
    %cst = arith.constant dense<0.000000e+00> : vector<256xf32>
    %9 = vector.multi_reduction <add>, %8, %cst [1] : vector<256x128xf32> to vector<256xf32>
    %10 = vector.shape_cast %9 : vector<256xf32> to vector<256x1xf32>
    %cst_7 = arith.constant 1.280000e+02 : f32
    %11 = vector.broadcast %cst_7 : f32 to vector<256x1xf32>
    %12 = arith.divf %10, %11 : vector<256x1xf32>
    %13 = vector.broadcast %12 : vector<256x1xf32> to vector<256x128xf32>
    %14 = arith.subf %8, %13 : vector<256x128xf32>
    %15 = arith.mulf %14, %14 : vector<256x128xf32>
    %cst_8 = arith.constant dense<0.000000e+00> : vector<256xf32>
    %16 = vector.multi_reduction <add>, %15, %cst_8 [1] : vector<256x128xf32> to vector<256xf32>
    %17 = vector.shape_cast %16 : vector<256xf32> to vector<256x1xf32>
    %cst_9 = arith.constant 1.280000e+02 : f32
    %18 = vector.broadcast %cst_9 : f32 to vector<256x1xf32>
    %19 = arith.divf %17, %18 : vector<256x1xf32>
    %cst_10 = arith.constant 9.99999997E-7 : f32
    %20 = vector.broadcast %cst_10 : f32 to vector<256x1xf32>
    %21 = arith.addf %19, %20 : vector<256x1xf32>
    %22 = math.rsqrt %21 : vector<256x1xf32>
    %23 = vector.broadcast %22 : vector<256x1xf32> to vector<256x128xf32>
    %24 = arith.mulf %14, %23 : vector<256x128xf32>
    %25 = vector.broadcast %1 : vector<1x128xf32> to vector<256x128xf32>
    %26 = arith.mulf %24, %25 : vector<256x128xf32>
    %27 = vector.broadcast %3 : vector<1x128xf32> to vector<256x128xf32>
    %28 = arith.addf %26, %27 : vector<256x128xf32>
    %c0_11 = arith.constant 0 : index
    %29 = arith.index_cast %5 : i32 to index
    %c0_12 = arith.constant 0 : index
    %30 = vector.load %arg5[%c0_11, %29, %c0_12] : memref<1x256x128xf32, #tpu.memory_space<vmem>>, vector<1x256x128xf32>
    %31 = vector.shape_cast %30 : vector<1x256x128xf32> to vector<256x128xf32>
    %32 = vector.shape_cast %28 : vector<256x128xf32> to vector<1x256x128xf32>
    tpu.vector_store %arg5[%c0_11, %29, %c0_12], %32 {strides = array<i32>} : memref<1x256x128xf32, #tpu.memory_space<vmem>>, vector<1x256x128xf32>,
    %c1_i32 = arith.constant 1 : i32
    return
  }
  func.func @transform_0(%arg0: i32, %arg1: i32) -> (i32, i32, i32) {
    %c0_i32 = arith.constant 0 : i32
    %c0_i32_0 = arith.constant 0 : i32
    return %arg0, %arg1, %c0_i32 : i32, i32, i32
  }
  func.func @transform_1(%arg0: i32, %arg1: i32) -> (i32, i32, i32) {
    %c0_i32 = arith.constant 0 : i32
    %c0_i32_0 = arith.constant 0 : i32
    %c0_i32_1 = arith.constant 0 : i32
    return %arg0, %c0_i32, %c0_i32_0 : i32, i32, i32
  }
  func.func @transform_2(%arg0: i32, %arg1: i32) -> (i32, i32, i32) {
    %c0_i32 = arith.constant 0 : i32
    %c0_i32_0 = arith.constant 0 : i32
    %c0_i32_1 = arith.constant 0 : i32
    return %arg0, %c0_i32, %c0_i32_0 : i32, i32, i32
  }
  func.func @transform_3(%arg0: i32, %arg1: i32) -> (i32, i32, i32) {
    %c0_i32 = arith.constant 0 : i32
    %c0_i32_0 = arith.constant 0 : i32
    return %arg0, %arg1, %c0_i32 : i32, i32, i32
  }
}

</mosaic_0001>

<llo_original>
// kernel: ada_layer_norm_zero.3
$region0: #{ada_layer_norm_zero.3}
  #allocation0 [shape = 'u32[]', space=smem, size = 0x4, offset = 0x4, fixed_abs, tag = 'smem constant byte address 0x4 - core index']
  #allocation1 [shape = 'u32[72,128]{1,0:T(1,128)}', space=vmem, size = 0x9000, scoped, tag = 'internal scratch']
  %s0 = inlined_call_operand.hbm [shape: f32[2,256,128], index: 0, kind: input, shape index: {}]
  %s1 = inlined_call_operand.vmem [shape: f32[2,1,128], index: 1, kind: input, shape index: {}]
  %s2 = inlined_call_operand.vmem [shape: f32[2,1,128], index: 2, kind: input, shape index: {}]
  %s3 = inlined_call_operand.hbm [shape: f32[2,256,128], index: 3, kind: output, shape index: {}]
  %s4 = sld [smem:[#allocation0]]
  $region49: #{ada_layer_norm_zero.3} parent=0
    _
  %s6 = ssub.s32 1, %s4
  %s7 = scalar_select 0, %s6, %s4
  $region1: #{ada_layer_norm_zero.3} parent=0
    #allocation2 [shape = 'u8[262144]{0}', space=vmem, size = 0x40000, scoped, tag = 'input window, operand 0']
    #allocation3 [shape = 's32[2]{0}', space=sflag, size = 0x8, scoped, tag = 'scoped memory for ada_layer_norm_zero.3']
    #allocation4 [shape = 's32[2]{0}', space=sflag, size = 0x8, scoped, tag = 'scoped memory for ada_layer_norm_zero.3']
    #allocation5 [shape = 'u8[262144]{0}', space=vmem, size = 0x40000, scoped, tag = 'output window, operand 0']
    %8 = vsyncpa [#allocation3], 0
    %s9 = scalar_lea.sflag [#allocation3], 1
    %10 = vsyncpa %s9, 0
    %11 = vsyncpa [#allocation4], 0
    %s12 = scalar_lea.sflag [#allocation4], 1
    %13 = vsyncpa %s12, 0
    loop: start=0, step=1, limit=4
    $region2: #{ada_layer_norm_zero.3} parent=1 // loop_pre_header
      _
    $region3: #{ada_layer_norm_zero.3} parent=1 // loop_header
      %s15 = sphi 0, %s19
      %p16 = scmp.ge.s32.totalorder %s15, 4
      %s22 = sphi 0, %s34
      %s23 = sphi 0, %s30
      %s24 = sphi 0, %s22
      %s25 = sphi 0, %s23
      %s26 = sphi 0, %s24
      %s27 = sphi 0, %s25
      %s39 = sphi 0, %s41
      %s42 = sphi 0, %s39
      %s43 = sphi 0, %s42
      %s59 = sphi 0, %s43
      %s65 = sphi 0, %s67
      %s68 = sphi 0, %s65
      %s69 = sphi 0, %s68
      %s85 = sphi 0, %s69
      %s91 = sphi 0, %s93
      %s94 = sphi 0, %s91
      %s95 = sphi 0, %s94
      %s111 = sphi 0, %s95
      %s119 = sphi 0, %s121
      %s122 = sphi 0, %s119
      %s123 = sphi 0, %s122
      %s139 = sphi 0, %s123
    $region4: #{ada_layer_norm_zero.3} parent=1 // loop_header_branch
      %18 = sbr.rel (%p16) target = $region8
    $region5: #{ada_layer_norm_zero.3} parent=1 // loop_body
      %s20 = ssub.s32 %s15, 1
      %s21 = ssub.s32 %s15, 2
      %s28 = sadd.s32 1, %s23
      %p29 = scmp.ge.s32.totalorder %s28, 1
      %s30 = scalar_select %p29, 0, %s28
      %s31 = sadd.s32 1, %s22
      %s32 = scalar_select %p29, %s31, %s22
      %p33 = scmp.ge.s32.totalorder %s32, 2
      %s34 = scalar_select %p33, 0, %s32
      %s35 = ssub.s32 %s22, %s34
      %s36 = ssub.s32 %s23, %s30
      %s37 = sor.u32 %s35, %s36
      %p38 = scmp.eq.s32.totalorder %s37, 0
      %s40 = sadd.s32 %s39, 1
      %s41 = scalar_select %p38, %s39, %s40
      %p44 = pneg %p38
      %p45 = scmp.eq.s32.totalorder %s15, 1
      %p46 = por %p44, %p45
      %p47 = scmp.ne.s32.totalorder %s39, %s42
      %p48 = scmp.eq.s32.totalorder %s15, 0
      %p49 = por %p47, %p48
      %p50 = scmp.ne.s32.totalorder %s39, %s42
      %p51 = scmp.eq.s32.totalorder %s20, 1
      %p52 = por %p50, %p51
      %p53 = scmp.ne.s32.totalorder %s42, %s43
      %p54 = scmp.eq.s32.totalorder %s20, 0
      %p55 = por %p53, %p54
      %p56 = scmp.ne.s32.totalorder %s42, %s43
      %p57 = scmp.eq.s32.totalorder %s21, 1
      %p58 = por %p56, %p57
      %p60 = scmp.ne.s32.totalorder %s43, %s59
      %p61 = scmp.eq.s32.totalorder %s21, 0
      %p62 = por %p60, %p61
      %s63 = ssub.s32 %s22, %s34
      %p64 = scmp.eq.s32.totalorder %s63, 0
      %s66 = sadd.s32 %s65, 1
      %s67 = scalar_select %p64, %s65, %s66
      %p70 = pneg %p64
      %p71 = scmp.eq.s32.totalorder %s15, 1
      %p72 = por %p70, %p71
      %p73 = scmp.ne.s32.totalorder %s65, %s68
      %p74 = scmp.eq.s32.totalorder %s15, 0
      %p75 = por %p73, %p74
      %p76 = scmp.ne.s32.totalorder %s65, %s68
      %p77 = scmp.eq.s32.totalorder %s20, 1
      %p78 = por %p76, %p77
      %p79 = scmp.ne.s32.totalorder %s68, %s69
      %p80 = scmp.eq.s32.totalorder %s20, 0
      %p81 = por %p79, %p80
      %p82 = scmp.ne.s32.totalorder %s68, %s69
      %p83 = scmp.eq.s32.totalorder %s21, 1
      %p84 = por %p82, %p83
      %p86 = scmp.ne.s32.totalorder %s69, %s85
      %p87 = scmp.eq.s32.totalorder %s21, 0
      %p88 = por %p86, %p87
      %s89 = ssub.s32 %s22, %s34
      %p90 = scmp.eq.s32.totalorder %s89, 0
      %s92 = sadd.s32 %s91, 1
      %s93 = scalar_select %p90, %s91, %s92
      %p96 = pneg %p90
      %p97 = scmp.eq.s32.totalorder %s15, 1
      %p98 = por %p96, %p97
      %p99 = scmp.ne.s32.totalorder %s91, %s94
      %p100 = scmp.eq.s32.totalorder %s15, 0
      %p101 = por %p99, %p100
      %p102 = scmp.ne.s32.totalorder %s91, %s94
      %p103 = scmp.eq.s32.totalorder %s20, 1
      %p104 = por %p102, %p103
      %p105 = scmp.ne.s32.totalorder %s94, %s95
      %p106 = scmp.eq.s32.totalorder %s20, 0
      %p107 = por %p105, %p106
      %p108 = scmp.ne.s32.totalorder %s94, %s95
      %p109 = scmp.eq.s32.totalorder %s21, 1
      %p110 = por %p108, %p109
      %p112 = scmp.ne.s32.totalorder %s95, %s111
      %p113 = scmp.eq.s32.totalorder %s21, 0
      %p114 = por %p112, %p113
      %s115 = ssub.s32 %s22, %s34
      %s116 = ssub.s32 %s23, %s30
      %s117 = sor.u32 %s115, %s116
      %p118 = scmp.eq.s32.totalorder %s117, 0
      %s120 = sadd.s32 %s119, 1
      %s121 = scalar_select %p118, %s119, %s120
      %p124 = pneg %p118
      %p125 = scmp.eq.s32.totalorder %s15, 1
      %p126 = por %p124, %p125
      %p127 = scmp.ne.s32.totalorder %s119, %s122
      %p128 = scmp.eq.s32.totalorder %s15, 0
      %p129 = por %p127, %p128
      %p130 = scmp.ne.s32.totalorder %s119, %s122
      %p131 = scmp.eq.s32.totalorder %s20, 1
      %p132 = por %p130, %p131
      %p133 = scmp.ne.s32.totalorder %s122, %s123
      %p134 = scmp.eq.s32.totalorder %s20, 0
      %p135 = por %p133, %p134
      %p136 = scmp.ne.s32.totalorder %s122, %s123
      %p137 = scmp.eq.s32.totalorder %s21, 1
      %p138 = por %p136, %p137
      %p140 = scmp.ne.s32.totalorder %s123, %s139
      %p141 = scmp.eq.s32.totalorder %s21, 0
      %p142 = por %p140, %p141
      %p143 = scmp.le.s32.totalorder 1, %s15
      %p144 = scmp.lt.s32.totalorder %s15, 3
      %p145 = pnand %p143, %p144
      %p146 = pneg %p145
      // Predicated region
      $region9: #{ada_layer_norm_zero.3} parent=5 // pred_check
        _
      $region10: #{ada_layer_norm_zero.3} parent=5 // pred_check_branch
        %148 = sbr.rel (%p145) target = $region12
      $region11: #{ada_layer_norm_zero.3} parent=5 // pred_region
        %s149 = ssub.s32 %s15, 1
      $region12: #{ada_layer_norm_zero.3} parent=5 // pred_fallthru
        _
      %p150 = scmp.lt.s32.totalorder %s15, 2
      // Predicated region
      $region13: #{ada_layer_norm_zero.3} parent=5 // pred_check
        %p151 = pneg %p150
      $region14: #{ada_layer_norm_zero.3} parent=5 // pred_check_branch
        %153 = sbr.rel (%p151) target = $region16
      $region15: #{ada_layer_norm_zero.3} parent=5 // pred_region
        // Predicated region
        $region17: #{ada_layer_norm_zero.3} parent=15 // pred_check
          %p154 = pneg %p49
        $region18: #{ada_layer_norm_zero.3} parent=15 // pred_check_branch
          %156 = sbr.rel (%p154) target = $region20
        $region19: #{ada_layer_norm_zero.3} parent=15 // pred_region
          %s157 = sand.u32 %s39, 1
          %s158 = scalar_lea.sflag [#allocation3], %s157
          %s159 = sand.u32 %s39, 1
          %s160 = smul.addr %s159, 256
          %s161 = scalar_lea.vmem [#allocation2], %s160
          %s162 = smul.u32 32, %s23
          %164 = vsyncadd %s158, 0
          %s165 = smul.addr %s22, 32
          %s166 = sadd.s32 %s162, %s165
          %s167 = smul.addr %s166, 8
          %s168 = scalar_lea.hbm %s0, %s167
          %s169 = sshll.u32 %s168, 4
          %s170 = int_to_ptr.hbm [resolvable:$true] %s169
          %s171 = sshll.u32 %s161, 4
          %s172 = int_to_ptr.vmem [resolvable:$true] %s171
          %177 = dma.hbm_to_vmem [thread:$0]  %s170, 4096, %s172, %s158, 128, 128, 8
        $region20: #{ada_layer_norm_zero.3} parent=15 // pred_fallthru
          _
        // Predicated region
        $region21: #{ada_layer_norm_zero.3} parent=15 // pred_check
          %p178 = pneg %p75
        $region22: #{ada_layer_norm_zero.3} parent=15 // pred_check_branch
          %180 = sbr.rel (%p178) target = $region24
        $region23: #{ada_layer_norm_zero.3} parent=15 // pred_region
          %p181 = scmp.lt.s32.totalorder %s22, 1
          %s182 = scalar_select %p181, %s22, 1
          %s183 = scalar_lea.vmem %s1, %s182
        $region24: #{ada_layer_norm_zero.3} parent=15 // pred_fallthru
          _
        // Predicated region
        $region25: #{ada_layer_norm_zero.3} parent=15 // pred_check
          %p184 = pneg %p101
        $region26: #{ada_layer_norm_zero.3} parent=15 // pred_check_branch
          %186 = sbr.rel (%p184) target = $region28
        $region27: #{ada_layer_norm_zero.3} parent=15 // pred_region
          %p187 = scmp.lt.s32.totalorder %s22, 1
          %s188 = scalar_select %p187, %s22, 1
          %s189 = scalar_lea.vmem %s2, %s188
        $region28: #{ada_layer_norm_zero.3} parent=15 // pred_fallthru
          _
      $region16: #{ada_layer_norm_zero.3} parent=5 // pred_fallthru
        _
      %p190 = scmp.le.s32.totalorder 1, %s15
      %p191 = scmp.lt.s32.totalorder %s15, 3
      %p192 = pnand %p190, %p191
      %p193 = pneg %p192
      // Predicated region
      $region29: #{ada_layer_norm_zero.3} parent=5 // pred_check
        _
      $region30: #{ada_layer_norm_zero.3} parent=5 // pred_check_branch
        %195 = sbr.rel (%p192) target = $region32
      $region31: #{ada_layer_norm_zero.3} parent=5 // pred_region
        %s196 = ssub.s32 %s15, 1
        %s197 = sand.u32 %s42, 1
        %s198 = scalar_lea.sflag [#allocation3], %s197
        %s199 = sand.u32 %s42, 1
        %s200 = smul.addr %s199, 256
        %s201 = scalar_lea.vmem [#allocation2], %s200
        // Predicated region
        $region33: #{ada_layer_norm_zero.3} parent=31 // pred_check
          %p202 = pneg %p55
        $region34: #{ada_layer_norm_zero.3} parent=31 // pred_check_branch
          %204 = sbr.rel (%p202) target = $region36
        $region35: #{ada_layer_norm_zero.3} parent=31 // pred_region
          %206 = dma.done %s198, 4096
        $region36: #{ada_layer_norm_zero.3} parent=31 // pred_fallthru
          _
        %s207 = sand.u32 %s42, 1
        %s208 = scalar_lea.sflag [#allocation3], %s207
        %s209 = sand.u32 %s42, 1
        %s210 = smul.addr %s209, 256
        %s211 = scalar_lea.vmem [#allocation2], %s210
        %p212 = pneg %p55
        %p213 = pneg %p52
        %p214 = scmp.lt.s32.totalorder %s24, 1
        %s215 = scalar_select %p214, %s24, 1
        %s216 = scalar_lea.vmem %s1, %s215
        %p217 = pneg %p81
        %p218 = pneg %p78
        %p219 = scmp.lt.s32.totalorder %s24, 1
        %s220 = scalar_select %p219, %s24, 1
        %s221 = scalar_lea.vmem %s2, %s220
        %p222 = pneg %p107
        %p223 = pneg %p104
        %p224 = pneg %p135
        %p225 = pneg %p132
        %s226 = sand.u32 %s122, 1
        %s227 = scalar_lea.sflag [#allocation4], %s226
        %s228 = sand.u32 %s122, 1
        %s229 = smul.addr %s228, 256
        %s230 = scalar_lea.vmem [#allocation5], %s229
        %s231 = smul.u32 32, %s25
        %p232 = scmp.lt.s32.totalorder %s24, 1
        %s233 = scalar_select %p232, %s24, 1
        %s234 = scalar_lea.vmem %s1, %s233
        %p235 = scmp.lt.s32.totalorder %s24, 1
        %s236 = scalar_select %p235, %s24, 1
        %s237 = scalar_lea.vmem %s2, %s236
        %s238 = smul.u32 32, %s25
        %v239 = vld [vmem:[%s237] sm:$0x1]
        %v240 = vld [vmem:[%s234] sm:$0x1]
        %v241 = vld [vmem:[%s201] sm:$0xff]
        %v242 = vld [vmem:[%s201 + $0x8] sm:$0xff]
        %v243 = vld [vmem:[%s201 + $0x10] sm:$0xff]
        %v244 = vld [vmem:[%s201 + $0x18] sm:$0xff]
        %v245 = vld [vmem:[%s201 + $0x20] sm:$0xff]
        %v246 = vld [vmem:[%s201 + $0x28] sm:$0xff]
        %v247 = vld [vmem:[%s201 + $0x30] sm:$0xff]
        %v248 = vld [vmem:[%s201 + $0x38] sm:$0xff]
        %v249 = vld [vmem:[%s201 + $0x40] sm:$0xff]
        %v250 = vld [vmem:[%s201 + $0x48] sm:$0xff]
        %v251 = vld [vmem:[%s201 + $0x50] sm:$0xff]
        %v252 = vld [vmem:[%s201 + $0x58] sm:$0xff]
        %v253 = vld [vmem:[%s201 + $0x60] sm:$0xff]
        %v254 = vld [vmem:[%s201 + $0x68] sm:$0xff]
        %v255 = vld [vmem:[%s201 + $0x70] sm:$0xff]
        %v256 = vld [vmem:[%s201 + $0x78] sm:$0xff]
        %v257 = vld [vmem:[%s201 + $0x80] sm:$0xff]
        %v258 = vld [vmem:[%s201 + $0x88] sm:$0xff]
        %v259 = vld [vmem:[%s201 + $0x90] sm:$0xff]
        %v260 = vld [vmem:[%s201 + $0x98] sm:$0xff]
        %v261 = vld [vmem:[%s201 + $0xa0] sm:$0xff]
        %v262 = vld [vmem:[%s201 + $0xa8] sm:$0xff]
        %v263 = vld [vmem:[%s201 + $0xb0] sm:$0xff]
        %v264 = vld [vmem:[%s201 + $0xb8] sm:$0xff]
        %v265 = vld [vmem:[%s201 + $0xc0] sm:$0xff]
        %v266 = vld [vmem:[%s201 + $0xc8] sm:$0xff]
        %v267 = vld [vmem:[%s201 + $0xd0] sm:$0xff]
        %v268 = vld [vmem:[%s201 + $0xd8] sm:$0xff]
        %v269 = vld [vmem:[%s201 + $0xe0] sm:$0xff]
        %v270 = vld [vmem:[%s201 + $0xe8] sm:$0xff]
        %v271 = vld [vmem:[%s201 + $0xf0] sm:$0xff]
        %v272 = vld [vmem:[%s201 + $0xf8] sm:$0xff]
        %273 = vadd.xlane.f32.xlu0 %v241
        %v274 = vpop.xlane.xlu0 %273
        %275 = vadd.xlane.f32.xlu0 %v242
        %v276 = vpop.xlane.xlu0 %275
        %277 = vadd.xlane.f32.xlu0 %v243
        %v278 = vpop.xlane.xlu0 %277
        %279 = vadd.xlane.f32.xlu0 %v244
        %v280 = vpop.xlane.xlu0 %279
        %281 = vadd.xlane.f32.xlu0 %v245
        %v282 = vpop.xlane.xlu0 %281
        %283 = vadd.xlane.f32.xlu0 %v246
        %v284 = vpop.xlane.xlu0 %283
        %285 = vadd.xlane.f32.xlu0 %v247
        %v286 = vpop.xlane.xlu0 %285
        %287 = vadd.xlane.f32.xlu0 %v248
        %v288 = vpop.xlane.xlu0 %287
        %289 = vadd.xlane.f32.xlu0 %v249
        %v290 = vpop.xlane.xlu0 %289
        %291 = vadd.xlane.f32.xlu0 %v250
        %v292 = vpop.xlane.xlu0 %291
        %293 = vadd.xlane.f32.xlu0 %v251
        %v294 = vpop.xlane.xlu0 %293
        %295 = vadd.xlane.f32.xlu0 %v252
        %v296 = vpop.xlane.xlu0 %295
        %297 = vadd.xlane.f32.xlu0 %v253
        %v298 = vpop.xlane.xlu0 %297
        %299 = vadd.xlane.f32.xlu0 %v254
        %v300 = vpop.xlane.xlu0 %299
        %301 = vadd.xlane.f32.xlu0 %v255
        %v302 = vpop.xlane.xlu0 %301
        %303 = vadd.xlane.f32.xlu0 %v256
        %v304 = vpop.xlane.xlu0 %303
        %305 = vadd.xlane.f32.xlu0 %v257
        %v306 = vpop.xlane.xlu0 %305
        %307 = vadd.xlane.f32.xlu0 %v258
        %v308 = vpop.xlane.xlu0 %307
        %309 = vadd.xlane.f32.xlu0 %v259
        %v310 = vpop.xlane.xlu0 %309
        %311 = vadd.xlane.f32.xlu0 %v260
        %v312 = vpop.xlane.xlu0 %311
        %313 = vadd.xlane.f32.xlu0 %v261
        %v314 = vpop.xlane.xlu0 %313
        %315 = vadd.xlane.f32.xlu0 %v262
        %v316 = vpop.xlane.xlu0 %315
        %317 = vadd.xlane.f32.xlu0 %v263
        %v318 = vpop.xlane.xlu0 %317
        %319 = vadd.xlane.f32.xlu0 %v264
        %v320 = vpop.xlane.xlu0 %319
        %321 = vadd.xlane.f32.xlu0 %v265
        %v322 = vpop.xlane.xlu0 %321
        %323 = vadd.xlane.f32.xlu0 %v266
        %v324 = vpop.xlane.xlu0 %323
        %325 = vadd.xlane.f32.xlu0 %v267
        %v326 = vpop.xlane.xlu0 %325
        %327 = vadd.xlane.f32.xlu0 %v268
        %v328 = vpop.xlane.xlu0 %327
        %329 = vadd.xlane.f32.xlu0 %v269
        %v330 = vpop.xlane.xlu0 %329
        %331 = vadd.xlane.f32.xlu0 %v270
        %v332 = vpop.xlane.xlu0 %331
        %333 = vadd.xlane.f32.xlu0 %v271
        %v334 = vpop.xlane.xlu0 %333
        %335 = vadd.xlane.f32.xlu0 %v272
        %v336 = vpop.xlane.xlu0 %335
        %v337 = vrcp.pop 128.0
        %v338 = vmul.f32 128.0, %v337
        %v339 = vsub.f32 1.0, %v338
        %v340 = vmul.f32 %v337, %v339
        %v341 = vadd.f32 %v337, %v340
        %vm342 = vweird.f32 %v337
        %v343 = vsel %vm342, %v337, %v341
        %v344 = vmul.f32 %v274, %v343
        %v345 = vmul.f32 %v276, %v343
        %v346 = vmul.f32 %v278, %v343
        %v347 = vmul.f32 %v280, %v343
        %v348 = vmul.f32 %v282, %v343
        %v349 = vmul.f32 %v284, %v343
        %v350 = vmul.f32 %v286, %v343
        %v351 = vmul.f32 %v288, %v343
        %v352 = vmul.f32 %v290, %v343
        %v353 = vmul.f32 %v292, %v343
        %v354 = vmul.f32 %v294, %v343
        %v355 = vmul.f32 %v296, %v343
        %v356 = vmul.f32 %v298, %v343
        %v357 = vmul.f32 %v300, %v343
        %v358 = vmul.f32 %v302, %v343
        %v359 = vmul.f32 %v304, %v343
        %v360 = vmul.f32 %v306, %v343
        %v361 = vmul.f32 %v308, %v343
        %v362 = vmul.f32 %v310, %v343
        %v363 = vmul.f32 %v312, %v343
        %v364 = vmul.f32 %v314, %v343
        %v365 = vmul.f32 %v316, %v343
        %v366 = vmul.f32 %v318, %v343
        %v367 = vmul.f32 %v320, %v343
        %v368 = vmul.f32 %v322, %v343
        %v369 = vmul.f32 %v324, %v343
        %v370 = vmul.f32 %v326, %v343
        %v371 = vmul.f32 %v328, %v343
        %v372 = vmul.f32 %v330, %v343
        %v373 = vmul.f32 %v332, %v343
        %v374 = vmul.f32 %v334, %v343
        %v375 = vmul.f32 %v336, %v343
        %v376 = vsub.f32 %v241, %v344
        %v377 = vsub.f32 %v242, %v345
        %v378 = vsub.f32 %v243, %v346
        %v379 = vsub.f32 %v244, %v347
        %v380 = vsub.f32 %v245, %v348
        %v381 = vsub.f32 %v246, %v349
        %v382 = vsub.f32 %v247, %v350
        %v383 = vsub.f32 %v248, %v351
        %v384 = vsub.f32 %v249, %v352
        %v385 = vsub.f32 %v250, %v353
        %v386 = vsub.f32 %v251, %v354
        %v387 = vsub.f32 %v252, %v355
        %v388 = vsub.f32 %v253, %v356
        %v389 = vsub.f32 %v254, %v357
        %v390 = vsub.f32 %v255, %v358
        %v391 = vsub.f32 %v256, %v359
        %v392 = vsub.f32 %v257, %v360
        %v393 = vsub.f32 %v258, %v361
        %v394 = vsub.f32 %v259, %v362
        %v395 = vsub.f32 %v260, %v363
        %v396 = vsub.f32 %v261, %v364
        %v397 = vsub.f32 %v262, %v365
        %v398 = vsub.f32 %v263, %v366
        %v399 = vsub.f32 %v264, %v367
        %v400 = vsub.f32 %v265, %v368
        %v401 = vsub.f32 %v266, %v369
        %v402 = vsub.f32 %v267, %v370
        %v403 = vsub.f32 %v268, %v371
        %v404 = vsub.f32 %v269, %v372
        %v405 = vsub.f32 %v270, %v373
        %v406 = vsub.f32 %v271, %v374
        %v407 = vsub.f32 %v272, %v375
        %v408 = vmul.f32 %v376, %v376
        %v409 = vmul.f32 %v377, %v377
        %v410 = vmul.f32 %v378, %v378
        %v411 = vmul.f32 %v379, %v379
        %v412 = vmul.f32 %v380, %v380
        %v413 = vmul.f32 %v381, %v381
        %v414 = vmul.f32 %v382, %v382
        %v415 = vmul.f32 %v383, %v383
        %v416 = vmul.f32 %v384, %v384
        %v417 = vmul.f32 %v385, %v385
        %v418 = vmul.f32 %v386, %v386
        %v419 = vmul.f32 %v387, %v387
        %v420 = vmul.f32 %v388, %v388
        %v421 = vmul.f32 %v389, %v389
        %v422 = vmul.f32 %v390, %v390
        %v423 = vmul.f32 %v391, %v391
        %v424 = vmul.f32 %v392, %v392
        %v425 = vmul.f32 %v393, %v393
        %v426 = vmul.f32 %v394, %v394
        %v427 = vmul.f32 %v395, %v395
        %v428 = vmul.f32 %v396, %v396
        %v429 = vmul.f32 %v397, %v397
        %v430 = vmul.f32 %v398, %v398
        %v431 = vmul.f32 %v399, %v399
        %v432 = vmul.f32 %v400, %v400
        %v433 = vmul.f32 %v401, %v401
        %v434 = vmul.f32 %v402, %v402
        %v435 = vmul.f32 %v403, %v403
        %v436 = vmul.f32 %v404, %v404
        %v437 = vmul.f32 %v405, %v405
        %v438 = vmul.f32 %v406, %v406
        %v439 = vmul.f32 %v407, %v407
        %440 = vadd.xlane.f32.xlu0 %v408
        %v441 = vpop.xlane.xlu0 %440
        %442 = vadd.xlane.f32.xlu0 %v409
        %v443 = vpop.xlane.xlu0 %442
        %444 = vadd.xlane.f32.xlu0 %v410
        %v445 = vpop.xlane.xlu0 %444
        %446 = vadd.xlane.f32.xlu0 %v411
        %v447 = vpop.xlane.xlu0 %446
        %448 = vadd.xlane.f32.xlu0 %v412
        %v449 = vpop.xlane.xlu0 %448
        %450 = vadd.xlane.f32.xlu0 %v413
        %v451 = vpop.xlane.xlu0 %450
        %452 = vadd.xlane.f32.xlu0 %v414
        %v453 = vpop.xlane.xlu0 %452
        %454 = vadd.xlane.f32.xlu0 %v415
        %v455 = vpop.xlane.xlu0 %454
        %456 = vadd.xlane.f32.xlu0 %v416
        %v457 = vpop.xlane.xlu0 %456
        %458 = vadd.xlane.f32.xlu0 %v417
        %v459 = vpop.xlane.xlu0 %458
        %460 = vadd.xlane.f32.xlu0 %v418
        %v461 = vpop.xlane.xlu0 %460
        %462 = vadd.xlane.f32.xlu0 %v419
        %v463 = vpop.xlane.xlu0 %462
        %464 = vadd.xlane.f32.xlu0 %v420
        %v465 = vpop.xlane.xlu0 %464
        %466 = vadd.xlane.f32.xlu0 %v421
        %v467 = vpop.xlane.xlu0 %466
        %468 = vadd.xlane.f32.xlu0 %v422
        %v469 = vpop.xlane.xlu0 %468
        %470 = vadd.xlane.f32.xlu0 %v423
        %v471 = vpop.xlane.xlu0 %470
        %472 = vadd.xlane.f32.xlu0 %v424
        %v473 = vpop.xlane.xlu0 %472
        %474 = vadd.xlane.f32.xlu0 %v425
        %v475 = vpop.xlane.xlu0 %474
        %476 = vadd.xlane.f32.xlu0 %v426
        %v477 = vpop.xlane.xlu0 %476
        %478 = vadd.xlane.f32.xlu0 %v427
        %v479 = vpop.xlane.xlu0 %478
        %480 = vadd.xlane.f32.xlu0 %v428
        %v481 = vpop.xlane.xlu0 %480
        %482 = vadd.xlane.f32.xlu0 %v429
        %v483 = vpop.xlane.xlu0 %482
        %484 = vadd.xlane.f32.xlu0 %v430
        %v485 = vpop.xlane.xlu0 %484
        %486 = vadd.xlane.f32.xlu0 %v431
        %v487 = vpop.xlane.xlu0 %486
        %488 = vadd.xlane.f32.xlu0 %v432
        %v489 = vpop.xlane.xlu0 %488
        %490 = vadd.xlane.f32.xlu0 %v433
        %v491 = vpop.xlane.xlu0 %490
        %492 = vadd.xlane.f32.xlu0 %v434
        %v493 = vpop.xlane.xlu0 %492
        %494 = vadd.xlane.f32.xlu0 %v435
        %v495 = vpop.xlane.xlu0 %494
        %496 = vadd.xlane.f32.xlu0 %v436
        %v497 = vpop.xlane.xlu0 %496
        %498 = vadd.xlane.f32.xlu0 %v437
        %v499 = vpop.xlane.xlu0 %498
        %500 = vadd.xlane.f32.xlu0 %v438
        %v501 = vpop.xlane.xlu0 %500
        %502 = vadd.xlane.f32.xlu0 %v439
        %v503 = vpop.xlane.xlu0 %502
        %v504 = vmul.f32 %v441, %v343
        %v505 = vmul.f32 %v443, %v343
        %v506 = vmul.f32 %v445, %v343
        %v507 = vmul.f32 %v447, %v343
        %v508 = vmul.f32 %v449, %v343
        %v509 = vmul.f32 %v451, %v343
        %v510 = vmul.f32 %v453, %v343
        %v511 = vmul.f32 %v455, %v343
        %v512 = vmul.f32 %v457, %v343
        %v513 = vmul.f32 %v459, %v343
        %v514 = vmul.f32 %v461, %v343
        %v515 = vmul.f32 %v463, %v343
        %v516 = vmul.f32 %v465, %v343
        %v517 = vmul.f32 %v467, %v343
        %v518 = vmul.f32 %v469, %v343
        %v519 = vmul.f32 %v471, %v343
        %v520 = vmul.f32 %v473, %v343
        %v521 = vmul.f32 %v475, %v343
        %v522 = vmul.f32 %v477, %v343
        %v523 = vmul.f32 %v479, %v343
        %v524 = vmul.f32 %v481, %v343
        %v525 = vmul.f32 %v483, %v343
        %v526 = vmul.f32 %v485, %v343
        %v527 = vmul.f32 %v487, %v343
        %v528 = vmul.f32 %v489, %v343
        %v529 = vmul.f32 %v491, %v343
        %v530 = vmul.f32 %v493, %v343
        %v531 = vmul.f32 %v495, %v343
        %v532 = vmul.f32 %v497, %v343
        %v533 = vmul.f32 %v499, %v343
        %v534 = vmul.f32 %v501, %v343
        %v535 = vmul.f32 %v503, %v343
        %v536 = vadd.f32 %v504, 1e-06
        %v537 = vadd.f32 %v505, 1e-06
        %v538 = vadd.f32 %v506, 1e-06
        %v539 = vadd.f32 %v507, 1e-06
        %v540 = vadd.f32 %v508, 1e-06
        %v541 = vadd.f32 %v509, 1e-06
        %v542 = vadd.f32 %v510, 1e-06
        %v543 = vadd.f32 %v511, 1e-06
        %v544 = vadd.f32 %v512, 1e-06
        %v545 = vadd.f32 %v513, 1e-06
        %v546 = vadd.f32 %v514, 1e-06
        %v547 = vadd.f32 %v515, 1e-06
        %v548 = vadd.f32 %v516, 1e-06
        %v549 = vadd.f32 %v517, 1e-06
        %v550 = vadd.f32 %v518, 1e-06
        %v551 = vadd.f32 %v519, 1e-06
        %v552 = vadd.f32 %v520, 1e-06
        %v553 = vadd.f32 %v521, 1e-06
        %v554 = vadd.f32 %v522, 1e-06
        %v555 = vadd.f32 %v523, 1e-06
        %v556 = vadd.f32 %v524, 1e-06
        %v557 = vadd.f32 %v525, 1e-06
        %v558 = vadd.f32 %v526, 1e-06
        %v559 = vadd.f32 %v527, 1e-06
        %v560 = vadd.f32 %v528, 1e-06
        %v561 = vadd.f32 %v529, 1e-06
        %v562 = vadd.f32 %v530, 1e-06
        %v563 = vadd.f32 %v531, 1e-06
        %v564 = vadd.f32 %v532, 1e-06
        %v565 = vadd.f32 %v533, 1e-06
        %v566 = vadd.f32 %v534, 1e-06
        %v567 = vadd.f32 %v535, 1e-06
        %v568 = vrsqrt.pop %v536
        %v569 = vmul.f32 %v568, %v536
        %v570 = vmul.f32 %v569, %v568
        %v571 = vmul.f32 0.5, %v570
        %v572 = vsub.f32 1.5, %v571
        %v573 = vmul.f32 %v568, %v572
        %vm574 = vweird.f32 %v536
        %vm575 = vweird.f32 %v568
        %vm576 = vmor %vm574, %vm575
        %v577 = vsel %vm576, %v568, %v573
        %v578 = vrsqrt.pop %v537
        %v579 = vmul.f32 %v578, %v537
        %v580 = vmul.f32 %v579, %v578
        %v581 = vmul.f32 0.5, %v580
        %v582 = vsub.f32 1.5, %v581
        %v583 = vmul.f32 %v578, %v582
        %vm584 = vweird.f32 %v537
        %vm585 = vweird.f32 %v578
        %vm586 = vmor %vm584, %vm585
        %v587 = vsel %vm586, %v578, %v583
        %v588 = vrsqrt.pop %v538
        %v589 = vmul.f32 %v588, %v538
        %v590 = vmul.f32 %v589, %v588
        %v591 = vmul.f32 0.5, %v590
        %v592 = vsub.f32 1.5, %v591
        %v593 = vmul.f32 %v588, %v592
        %vm594 = vweird.f32 %v538
        %vm595 = vweird.f32 %v588
        %vm596 = vmor %vm594, %vm595
        %v597 = vsel %vm596, %v588, %v593
        %v598 = vrsqrt.pop %v539
        %v599 = vmul.f32 %v598, %v539
        %v600 = vmul.f32 %v599, %v598
        %v601 = vmul.f32 0.5, %v600
        %v602 = vsub.f32 1.5, %v601
        %v603 = vmul.f32 %v598, %v602
        %vm604 = vweird.f32 %v539
        %vm605 = vweird.f32 %v598
        %vm606 = vmor %vm604, %vm605
        %v607 = vsel %vm606, %v598, %v603
        %v608 = vrsqrt.pop %v540
        %v609 = vmul.f32 %v608, %v540
        %v610 = vmul.f32 %v609, %v608
        %v611 = vmul.f32 0.5, %v610
        %v612 = vsub.f32 1.5, %v611
        %v613 = vmul.f32 %v608, %v612
        %vm614 = vweird.f32 %v540
        %vm615 = vweird.f32 %v608
        %vm616 = vmor %vm614, %vm615
        %v617 = vsel %vm616, %v608, %v613
        %v618 = vrsqrt.pop %v541
        %v619 = vmul.f32 %v618, %v541
        %v620 = vmul.f32 %v619, %v618
        %v621 = vmul.f32 0.5, %v620
        %v622 = vsub.f32 1.5, %v621
        %v623 = vmul.f32 %v618, %v622
        %vm624 = vweird.f32 %v541
        %vm625 = vweird.f32 %v618
        %vm626 = vmor %vm624, %vm625
        %v627 = vsel %vm626, %v618, %v623
        %v628 = vrsqrt.pop %v542
        %v629 = vmul.f32 %v628, %v542
        %v630 = vmul.f32 %v629, %v628
        %v631 = vmul.f32 0.5, %v630
        %v632 = vsub.f32 1.5, %v631
        %v633 = vmul.f32 %v628, %v632
        %vm634 = vweird.f32 %v542
        %vm635 = vweird.f32 %v628
        %vm636 = vmor %vm634, %vm635
        %v637 = vsel %vm636, %v628, %v633
        %v638 = vrsqrt.pop %v543
        %v639 = vmul.f32 %v638, %v543
        %v640 = vmul.f32 %v639, %v638
        %v641 = vmul.f32 0.5, %v640
        %v642 = vsub.f32 1.5, %v641
        %v643 = vmul.f32 %v638, %v642
        %vm644 = vweird.f32 %v543
        %vm645 = vweird.f32 %v638
        %vm646 = vmor %vm644, %vm645
        %v647 = vsel %vm646, %v638, %v643
        %v648 = vrsqrt.pop %v544
        %v649 = vmul.f32 %v648, %v544
        %v650 = vmul.f32 %v649, %v648
        %v651 = vmul.f32 0.5, %v650
        %v652 = vsub.f32 1.5, %v651
        %v653 = vmul.f32 %v648, %v652
        %vm654 = vweird.f32 %v544
        %vm655 = vweird.f32 %v648
        %vm656 = vmor %vm654, %vm655
        %v657 = vsel %vm656, %v648, %v653
        %v658 = vrsqrt.pop %v545
        %v659 = vmul.f32 %v658, %v545
        %v660 = vmul.f32 %v659, %v658
        %v661 = vmul.f32 0.5, %v660
        %v662 = vsub.f32 1.5, %v661
        %v663 = vmul.f32 %v658, %v662
        %vm664 = vweird.f32 %v545
        %vm665 = vweird.f32 %v658
        %vm666 = vmor %vm664, %vm665
        %v667 = vsel %vm666, %v658, %v663
        %v668 = vrsqrt.pop %v546
        %v669 = vmul.f32 %v668, %v546
        %v670 = vmul.f32 %v669, %v668
        %v671 = vmul.f32 0.5, %v670
        %v672 = vsub.f32 1.5, %v671
        %v673 = vmul.f32 %v668, %v672
        %vm674 = vweird.f32 %v546
        %vm675 = vweird.f32 %v668
        %vm676 = vmor %vm674, %vm675
        %v677 = vsel %vm676, %v668, %v673
        %v678 = vrsqrt.pop %v547
        %v679 = vmul.f32 %v678, %v547
        %v680 = vmul.f32 %v679, %v678
        %v681 = vmul.f32 0.5, %v680
        %v682 = vsub.f32 1.5, %v681
        %v683 = vmul.f32 %v678, %v682
        %vm684 = vweird.f32 %v547
        %vm685 = vweird.f32 %v678
        %vm686 = vmor %vm684, %vm685
        %v687 = vsel %vm686, %v678, %v683
        %v688 = vrsqrt.pop %v548
        %v689 = vmul.f32 %v688, %v548
        %v690 = vmul.f32 %v689, %v688
        %v691 = vmul.f32 0.5, %v690
        %v692 = vsub.f32 1.5, %v691
        %v693 = vmul.f32 %v688, %v692
        %vm694 = vweird.f32 %v548
        %vm695 = vweird.f32 %v688
        %vm696 = vmor %vm694, %vm695
        %v697 = vsel %vm696, %v688, %v693
        %v698 = vrsqrt.pop %v549
        %v699 = vmul.f32 %v698, %v549
        %v700 = vmul.f32 %v699, %v698
        %v701 = vmul.f32 0.5, %v700
        %v702 = vsub.f32 1.5, %v701
        %v703 = vmul.f32 %v698, %v702
        %vm704 = vweird.f32 %v549
        %vm705 = vweird.f32 %v698
        %vm706 = vmor %vm704, %vm705
        %v707 = vsel %vm706, %v698, %v703
        %v708 = vrsqrt.pop %v550
        %v709 = vmul.f32 %v708, %v550
        %v710 = vmul.f32 %v709, %v708
        %v711 = vmul.f32 0.5, %v710
        %v712 = vsub.f32 1.5, %v711
        %v713 = vmul.f32 %v708, %v712
        %vm714 = vweird.f32 %v550
        %vm715 = vweird.f32 %v708
        %vm716 = vmor %vm714, %vm715
        %v717 = vsel %vm716, %v708, %v713
        %v718 = vrsqrt.pop %v551
        %v719 = vmul.f32 %v718, %v551
        %v720 = vmul.f32 %v719, %v718
        %v721 = vmul.f32 0.5, %v720
        %v722 = vsub.f32 1.5, %v721
        %v723 = vmul.f32 %v718, %v722
        %vm724 = vweird.f32 %v551
        %vm725 = vweird.f32 %v718
        %vm726 = vmor %vm724, %vm725
        %v727 = vsel %vm726, %v718, %v723
        %v728 = vrsqrt.pop %v552
        %v729 = vmul.f32 %v728, %v552
        %v730 = vmul.f32 %v729, %v728
        %v731 = vmul.f32 0.5, %v730
        %v732 = vsub.f32 1.5, %v731
        %v733 = vmul.f32 %v728, %v732
        %vm734 = vweird.f32 %v552
        %vm735 = vweird.f32 %v728
        %vm736 = vmor %vm734, %vm735
        %v737 = vsel %vm736, %v728, %v733
        %v738 = vrsqrt.pop %v553
        %v739 = vmul.f32 %v738, %v553
        %v740 = vmul.f32 %v739, %v738
        %v741 = vmul.f32 0.5, %v740
        %v742 = vsub.f32 1.5, %v741
        %v743 = vmul.f32 %v738, %v742
        %vm744 = vweird.f32 %v553
        %vm745 = vweird.f32 %v738
        %vm746 = vmor %vm744, %vm745
        %v747 = vsel %vm746, %v738, %v743
        %v748 = vrsqrt.pop %v554
        %v749 = vmul.f32 %v748, %v554
        %v750 = vmul.f32 %v749, %v748
        %v751 = vmul.f32 0.5, %v750
        %v752 = vsub.f32 1.5, %v751
        %v753 = vmul.f32 %v748, %v752
        %vm754 = vweird.f32 %v554
        %vm755 = vweird.f32 %v748
        %vm756 = vmor %vm754, %vm755
        %v757 = vsel %vm756, %v748, %v753
        %v758 = vrsqrt.pop %v555
        %v759 = vmul.f32 %v758, %v555
        %v760 = vmul.f32 %v759, %v758
        %v761 = vmul.f32 0.5, %v760
        %v762 = vsub.f32 1.5, %v761
        %v763 = vmul.f32 %v758, %v762
        %vm764 = vweird.f32 %v555
        %vm765 = vweird.f32 %v758
        %vm766 = vmor %vm764, %vm765
        %v767 = vsel %vm766, %v758, %v763
        %v768 = vrsqrt.pop %v556
        %v769 = vmul.f32 %v768, %v556
        %v770 = vmul.f32 %v769, %v768
        %v771 = vmul.f32 0.5, %v770
        %v772 = vsub.f32 1.5, %v771
        %v773 = vmul.f32 %v768, %v772
        %vm774 = vweird.f32 %v556
        %vm775 = vweird.f32 %v768
        %vm776 = vmor %vm774, %vm775
        %v777 = vsel %vm776, %v768, %v773
        %v778 = vrsqrt.pop %v557
        %v779 = vmul.f32 %v778, %v557
        %v780 = vmul.f32 %v779, %v778
        %v781 = vmul.f32 0.5, %v780
        %v782 = vsub.f32 1.5, %v781
        %v783 = vmul.f32 %v778, %v782
        %vm784 = vweird.f32 %v557
        %vm785 = vweird.f32 %v778
        %vm786 = vmor %vm784, %vm785
        %v787 = vsel %vm786, %v778, %v783
        %v788 = vrsqrt.pop %v558
        %v789 = vmul.f32 %v788, %v558
        %v790 = vmul.f32 %v789, %v788
        %v791 = vmul.f32 0.5, %v790
        %v792 = vsub.f32 1.5, %v791
        %v793 = vmul.f32 %v788, %v792
        %vm794 = vweird.f32 %v558
        %vm795 = vweird.f32 %v788
        %vm796 = vmor %vm794, %vm795
        %v797 = vsel %vm796, %v788, %v793
        %v798 = vrsqrt.pop %v559
        %v799 = vmul.f32 %v798, %v559
        %v800 = vmul.f32 %v799, %v798
        %v801 = vmul.f32 0.5, %v800
        %v802 = vsub.f32 1.5, %v801
        %v803 = vmul.f32 %v798, %v802
        %vm804 = vweird.f32 %v559
        %vm805 = vweird.f32 %v798
        %vm806 = vmor %vm804, %vm805
        %v807 = vsel %vm806, %v798, %v803
        %v808 = vrsqrt.pop %v560
        %v809 = vmul.f32 %v808, %v560
        %v810 = vmul.f32 %v809, %v808
        %v811 = vmul.f32 0.5, %v810
        %v812 = vsub.f32 1.5, %v811
        %v813 = vmul.f32 %v808, %v812
        %vm814 = vweird.f32 %v560
        %vm815 = vweird.f32 %v808
        %vm816 = vmor %vm814, %vm815
        %v817 = vsel %vm816, %v808, %v813
        %v818 = vrsqrt.pop %v561
        %v819 = vmul.f32 %v818, %v561
        %v820 = vmul.f32 %v819, %v818
        %v821 = vmul.f32 0.5, %v820
        %v822 = vsub.f32 1.5, %v821
        %v823 = vmul.f32 %v818, %v822
        %vm824 = vweird.f32 %v561
        %vm825 = vweird.f32 %v818
        %vm826 = vmor %vm824, %vm825
        %v827 = vsel %vm826, %v818, %v823
        %v828 = vrsqrt.pop %v562
        %v829 = vmul.f32 %v828, %v562
        %v830 = vmul.f32 %v829, %v828
        %v831 = vmul.f32 0.5, %v830
        %v832 = vsub.f32 1.5, %v831
        %v833 = vmul.f32 %v828, %v832
        %vm834 = vweird.f32 %v562
        %vm835 = vweird.f32 %v828
        %vm836 = vmor %vm834, %vm835
        %v837 = vsel %vm836, %v828, %v833
        %v838 = vrsqrt.pop %v563
        %v839 = vmul.f32 %v838, %v563
        %v840 = vmul.f32 %v839, %v838
        %v841 = vmul.f32 0.5, %v840
        %v842 = vsub.f32 1.5, %v841
        %v843 = vmul.f32 %v838, %v842
        %vm844 = vweird.f32 %v563
        %vm845 = vweird.f32 %v838
        %vm846 = vmor %vm844, %vm845
        %v847 = vsel %vm846, %v838, %v843
        %v848 = vrsqrt.pop %v564
        %v849 = vmul.f32 %v848, %v564
        %v850 = vmul.f32 %v849, %v848
        %v851 = vmul.f32 0.5, %v850
        %v852 = vsub.f32 1.5, %v851
        %v853 = vmul.f32 %v848, %v852
        %vm854 = vweird.f32 %v564
        %vm855 = vweird.f32 %v848
        %vm856 = vmor %vm854, %vm855
        %v857 = vsel %vm856, %v848, %v853
        %v858 = vrsqrt.pop %v565
        %v859 = vmul.f32 %v858, %v565
        %v860 = vmul.f32 %v859, %v858
        %v861 = vmul.f32 0.5, %v860
        %v862 = vsub.f32 1.5, %v861
        %v863 = vmul.f32 %v858, %v862
        %vm864 = vweird.f32 %v565
        %vm865 = vweird.f32 %v858
        %vm866 = vmor %vm864, %vm865
        %v867 = vsel %vm866, %v858, %v863
        %v868 = vrsqrt.pop %v566
        %v869 = vmul.f32 %v868, %v566
        %v870 = vmul.f32 %v869, %v868
        %v871 = vmul.f32 0.5, %v870
        %v872 = vsub.f32 1.5, %v871
        %v873 = vmul.f32 %v868, %v872
        %vm874 = vweird.f32 %v566
        %vm875 = vweird.f32 %v868
        %vm876 = vmor %vm874, %vm875
        %v877 = vsel %vm876, %v868, %v873
        %v878 = vrsqrt.pop %v567
        %v879 = vmul.f32 %v878, %v567
        %v880 = vmul.f32 %v879, %v878
        %v881 = vmul.f32 0.5, %v880
        %v882 = vsub.f32 1.5, %v881
        %v883 = vmul.f32 %v878, %v882
        %vm884 = vweird.f32 %v567
        %vm885 = vweird.f32 %v878
        %vm886 = vmor %vm884, %vm885
        %v887 = vsel %vm886, %v878, %v883
        %v888 = vmul.f32 %v376, %v577
        %v889 = vmul.f32 %v377, %v587
        %v890 = vmul.f32 %v378, %v597
        %v891 = vmul.f32 %v379, %v607
        %v892 = vmul.f32 %v380, %v617
        %v893 = vmul.f32 %v381, %v627
        %v894 = vmul.f32 %v382, %v637
        %v895 = vmul.f32 %v383, %v647
        %v896 = vmul.f32 %v384, %v657
        %v897 = vmul.f32 %v385, %v667
        %v898 = vmul.f32 %v386, %v677
        %v899 = vmul.f32 %v387, %v687
        %v900 = vmul.f32 %v388, %v697
        %v901 = vmul.f32 %v389, %v707
        %v902 = vmul.f32 %v390, %v717
        %v903 = vmul.f32 %v391, %v727
        %v904 = vmul.f32 %v392, %v737
        %v905 = vmul.f32 %v393, %v747
        %v906 = vmul.f32 %v394, %v757
        %v907 = vmul.f32 %v395, %v767
        %v908 = vmul.f32 %v396, %v777
        %v909 = vmul.f32 %v397, %v787
        %v910 = vmul.f32 %v398, %v797
        %v911 = vmul.f32 %v399, %v807
        %v912 = vmul.f32 %v400, %v817
        %v913 = vmul.f32 %v401, %v827
        %v914 = vmul.f32 %v402, %v837
        %v915 = vmul.f32 %v403, %v847
        %v916 = vmul.f32 %v404, %v857
        %v917 = vmul.f32 %v405, %v867
        %v918 = vmul.f32 %v406, %v877
        %v919 = vmul.f32 %v407, %v887
        %v921 = vperm.slane %v239, 0
        %v923 = vmul.f32 %v888, %v921
        %v924 = vmul.f32 %v889, %v921
        %v925 = vmul.f32 %v890, %v921
        %v926 = vmul.f32 %v891, %v921
        %v927 = vmul.f32 %v892, %v921
        %v928 = vmul.f32 %v893, %v921
        %v929 = vmul.f32 %v894, %v921
        %v930 = vmul.f32 %v895, %v921
        %v931 = vmul.f32 %v896, %v921
        %v932 = vmul.f32 %v897, %v921
        %v933 = vmul.f32 %v898, %v921
        %v934 = vmul.f32 %v899, %v921
        %v935 = vmul.f32 %v900, %v921
        %v936 = vmul.f32 %v901, %v921
        %v937 = vmul.f32 %v902, %v921
        %v938 = vmul.f32 %v903, %v921
        %v939 = vmul.f32 %v904, %v921
        %v940 = vmul.f32 %v905, %v921
        %v941 = vmul.f32 %v906, %v921
        %v942 = vmul.f32 %v907, %v921
        %v943 = vmul.f32 %v908, %v921
        %v944 = vmul.f32 %v909, %v921
        %v945 = vmul.f32 %v910, %v921
        %v946 = vmul.f32 %v911, %v921
        %v947 = vmul.f32 %v912, %v921
        %v948 = vmul.f32 %v913, %v921
        %v949 = vmul.f32 %v914, %v921
        %v950 = vmul.f32 %v915, %v921
        %v951 = vmul.f32 %v916, %v921
        %v952 = vmul.f32 %v917, %v921
        %v953 = vmul.f32 %v918, %v921
        %v954 = vmul.f32 %v919, %v921
        %v956 = vperm.slane %v240, 0
        %v958 = vadd.f32 %v923, %v956
        %v959 = vadd.f32 %v924, %v956
        %v960 = vadd.f32 %v925, %v956
        %v961 = vadd.f32 %v926, %v956
        %v962 = vadd.f32 %v927, %v956
        %v963 = vadd.f32 %v928, %v956
        %v964 = vadd.f32 %v929, %v956
        %v965 = vadd.f32 %v930, %v956
        %v966 = vadd.f32 %v931, %v956
        %v967 = vadd.f32 %v932, %v956
        %v968 = vadd.f32 %v933, %v956
        %v969 = vadd.f32 %v934, %v956
        %v970 = vadd.f32 %v935, %v956
        %v971 = vadd.f32 %v936, %v956
        %v972 = vadd.f32 %v937, %v956
        %v973 = vadd.f32 %v938, %v956
        %v974 = vadd.f32 %v939, %v956
        %v975 = vadd.f32 %v940, %v956
        %v976 = vadd.f32 %v941, %v956
        %v977 = vadd.f32 %v942, %v956
        %v978 = vadd.f32 %v943, %v956
        %v979 = vadd.f32 %v944, %v956
        %v980 = vadd.f32 %v945, %v956
        %v981 = vadd.f32 %v946, %v956
        %v982 = vadd.f32 %v947, %v956
        %v983 = vadd.f32 %v948, %v956
        %v984 = vadd.f32 %v949, %v956
        %v985 = vadd.f32 %v950, %v956
        %v986 = vadd.f32 %v951, %v956
        %v987 = vadd.f32 %v952, %v956
        %v988 = vadd.f32 %v953, %v956
        %v989 = vadd.f32 %v954, %v956
        %990 = vst [vmem:[%s230] sm:$0xff] %v958
        %991 = vst [vmem:[%s230 + $0x8] sm:$0xff] %v959
        %992 = vst [vmem:[%s230 + $0x10] sm:$0xff] %v960
        %993 = vst [vmem:[%s230 + $0x18] sm:$0xff] %v961
        %994 = vst [vmem:[%s230 + $0x20] sm:$0xff] %v962
        %995 = vst [vmem:[%s230 + $0x28] sm:$0xff] %v963
        %996 = vst [vmem:[%s230 + $0x30] sm:$0xff] %v964
        %997 = vst [vmem:[%s230 + $0x38] sm:$0xff] %v965
        %998 = vst [vmem:[%s230 + $0x40] sm:$0xff] %v966
        %999 = vst [vmem:[%s230 + $0x48] sm:$0xff] %v967
        %1000 = vst [vmem:[%s230 + $0x50] sm:$0xff] %v968
        %1001 = vst [vmem:[%s230 + $0x58] sm:$0xff] %v969
        %1002 = vst [vmem:[%s230 + $0x60] sm:$0xff] %v970
        %1003 = vst [vmem:[%s230 + $0x68] sm:$0xff] %v971
        %1004 = vst [vmem:[%s230 + $0x70] sm:$0xff] %v972
        %1005 = vst [vmem:[%s230 + $0x78] sm:$0xff] %v973
        %1006 = vst [vmem:[%s230 + $0x80] sm:$0xff] %v974
        %1007 = vst [vmem:[%s230 + $0x88] sm:$0xff] %v975
        %1008 = vst [vmem:[%s230 + $0x90] sm:$0xff] %v976
        %1009 = vst [vmem:[%s230 + $0x98] sm:$0xff] %v977
        %1010 = vst [vmem:[%s230 + $0xa0] sm:$0xff] %v978
        %1011 = vst [vmem:[%s230 + $0xa8] sm:$0xff] %v979
        %1012 = vst [vmem:[%s230 + $0xb0] sm:$0xff] %v980
        %1013 = vst [vmem:[%s230 + $0xb8] sm:$0xff] %v981
        %1014 = vst [vmem:[%s230 + $0xc0] sm:$0xff] %v982
        %1015 = vst [vmem:[%s230 + $0xc8] sm:$0xff] %v983
        %1016 = vst [vmem:[%s230 + $0xd0] sm:$0xff] %v984
        %1017 = vst [vmem:[%s230 + $0xd8] sm:$0xff] %v985
        %1018 = vst [vmem:[%s230 + $0xe0] sm:$0xff] %v986
        %1019 = vst [vmem:[%s230 + $0xe8] sm:$0xff] %v987
        %1020 = vst [vmem:[%s230 + $0xf0] sm:$0xff] %v988
        %1021 = vst [vmem:[%s230 + $0xf8] sm:$0xff] %v989
        %s1022 = sand.u32 %s122, 1
        %s1023 = scalar_lea.sflag [#allocation4], %s1022
        %s1024 = sand.u32 %s122, 1
        %s1025 = smul.addr %s1024, 256
        %s1026 = scalar_lea.vmem [#allocation5], %s1025
        // Predicated region
        $region37: #{ada_layer_norm_zero.3} parent=31 // pred_check
          %p1027 = pneg %p132
        $region38: #{ada_layer_norm_zero.3} parent=31 // pred_check_branch
          %1029 = sbr.rel (%p1027) target = $region40
        $region39: #{ada_layer_norm_zero.3} parent=31 // pred_region
          %s1030 = smul.u32 32, %s25
          %1032 = vsyncadd %s1023, 0
          %s1033 = smul.addr %s24, 32
          %s1034 = sadd.s32 %s1030, %s1033
          %s1035 = smul.addr %s1034, 8
          %s1036 = scalar_lea.hbm %s3, %s1035
          %s1037 = sshll.u32 %s1026, 4
          %s1038 = int_to_ptr.vmem [resolvable:$true] %s1037
          %s1039 = sshll.u32 %s1036, 4
          %s1040 = int_to_ptr.hbm [resolvable:$true] %s1039
          %1045 = dma.vmem_to_hbm [thread:$0]  %s1038, 4096, %s1040, %s1023, 128, 128, 8
        $region40: #{ada_layer_norm_zero.3} parent=31 // pred_fallthru
          _
      $region32: #{ada_layer_norm_zero.3} parent=5 // pred_fallthru
        _
      %p1046 = scmp.le.s32.totalorder 2, %s15
      // Predicated region
      $region41: #{ada_layer_norm_zero.3} parent=5 // pred_check
        %p1047 = pneg %p1046
      $region42: #{ada_layer_norm_zero.3} parent=5 // pred_check_branch
        %1049 = sbr.rel (%p1047) target = $region44
      $region43: #{ada_layer_norm_zero.3} parent=5 // pred_region
        %s1050 = ssub.s32 %s15, 2
        // Predicated region
        $region45: #{ada_layer_norm_zero.3} parent=43 // pred_check
          %p1051 = pneg %p138
        $region46: #{ada_layer_norm_zero.3} parent=43 // pred_check_branch
          %1053 = sbr.rel (%p1051) target = $region48
        $region47: #{ada_layer_norm_zero.3} parent=43 // pred_region
          %s1054 = sand.u32 %s123, 1
          %s1055 = scalar_lea.sflag [#allocation4], %s1054
          %s1056 = sand.u32 %s123, 1
          %s1057 = smul.addr %s1056, 256
          %s1058 = scalar_lea.vmem [#allocation5], %s1057
          %1060 = dma.done %s1055, 4096
        $region48: #{ada_layer_norm_zero.3} parent=43 // pred_fallthru
          _
      $region44: #{ada_layer_norm_zero.3} parent=5 // pred_fallthru
        _
    $region6: #{ada_layer_norm_zero.3} parent=1 // loop_footer
      %s19 = sadd.s32 1, %s15
    $region7: #{ada_layer_norm_zero.3} parent=1 // loop_footer_branch
      %14 = sbr.rel target = $region3
    $region8: #{ada_layer_norm_zero.3} parent=1 // loop_exit
      _
    %1061 = vsyncpa [#allocation3], 1
    %s1062 = scalar_lea.sflag [#allocation3], 1
    %1063 = vsyncpa %s1062, 1
    %1064 = vsyncpa [#allocation4], 1
    %s1065 = scalar_lea.sflag [#allocation4], 1
    %1066 = vsyncpa %s1065, 1

// kernel: ada_layer_norm_zero.2
$region0: #{ada_layer_norm_zero.2}
  #allocation0 [shape = 'u32[]', space=smem, size = 0x4, offset = 0x4, fixed_abs, tag = 'smem constant byte address 0x4 - core index']
  #allocation1 [shape = 'u32[72,128]{1,0:T(1,128)}', space=vmem, size = 0x9000, scoped, tag = 'internal scratch']
  #allocation2 [shape = 'f32[2,32]{1,0:T(2,128)}', space=vmem, size = 0x400, scoped, tag = 'scratch operand']
  %s0 = inlined_call_operand.vmem [shape: s32[2], index: 0, kind: input, shape index: {}]
  %s1 = inlined_call_operand.vmem [shape: f32[8,32], index: 1, kind: input, shape index: {}]
  %s2 = inlined_call_operand.hbm [shape: f32[32,384], index: 2, kind: input, shape index: {}]
  %s3 = inlined_call_operand.vmem [shape: f32[1,384], index: 3, kind: input, shape index: {}]
  %s4 = inlined_call_operand.vmem [shape: f32[2,384], index: 4, kind: output, shape index: {}]
  %s5 = sld [smem:[#allocation0]]
  $region34: #{ada_layer_norm_zero.2} parent=0
    _
  %s7 = ssub.s32 1, %s5
  %s8 = scalar_select 0, %s7, %s5
  $region1: #{ada_layer_norm_zero.2} parent=0
    #allocation3 [shape = 'u8[512]{0}', space=smem, size = 0x200, scoped, tag = 'input window, operand 0, single buffered']
    #allocation4 [shape = 's32[1]{0}', space=sflag, size = 0x4, scoped, tag = 'scoped memory for ada_layer_norm_zero.2']
    #allocation5 [shape = 's32[1]{0}', space=sflag, size = 0x4, scoped, tag = 'scoped memory for ada_layer_norm_zero.2']
    #allocation6 [shape = 'u8[49152]{0}', space=vmem, size = 0xc000, scoped, tag = 'input window, operand 2, single buffered']
    %9 = vsyncpa [#allocation5], 0
    %10 = vsyncpa [#allocation4], 0
    // Predicated region
    $region2: #{ada_layer_norm_zero.2} parent=1 // pred_check
      _
    $region3: #{ada_layer_norm_zero.2} parent=1 // pred_check_branch
      %12 = sbr.rel (0) target = $region5
    $region4: #{ada_layer_norm_zero.2} parent=1 // pred_region
      %14 = vsyncadd [#allocation5], 0
      %s16 = sshll.u32 %s0, 4
      %s17 = int_to_ptr.vmem [resolvable:$true] %s16
      %19 = dma.vmem_to_smem %s17, 16, [#allocation3], [#allocation5]
    $region5: #{ada_layer_norm_zero.2} parent=1 // pred_fallthru
      _
    // Predicated region
    $region6: #{ada_layer_norm_zero.2} parent=1 // pred_check
      _
    $region7: #{ada_layer_norm_zero.2} parent=1 // pred_check_branch
      %21 = sbr.rel (0) target = $region9
    $region8: #{ada_layer_norm_zero.2} parent=1 // pred_region
      _
    $region9: #{ada_layer_norm_zero.2} parent=1 // pred_fallthru
      _
    // Predicated region
    $region10: #{ada_layer_norm_zero.2} parent=1 // pred_check
      _
    $region11: #{ada_layer_norm_zero.2} parent=1 // pred_check_branch
      %23 = sbr.rel (0) target = $region13
    $region12: #{ada_layer_norm_zero.2} parent=1 // pred_region
      %25 = vsyncadd [#allocation4], 0
      %s26 = sshll.u32 %s2, 4
      %s27 = int_to_ptr.hbm [resolvable:$true] %s26
      %s28 = sshll.u32 [#allocation6], 4
      %s29 = int_to_ptr.vmem [resolvable:$true] %s28
      %34 = dma.hbm_to_vmem [thread:$0]  %s27, 1536, %s29, [#allocation4], 384, 384, 24
    $region13: #{ada_layer_norm_zero.2} parent=1 // pred_fallthru
      _
    // Predicated region
    $region14: #{ada_layer_norm_zero.2} parent=1 // pred_check
      _
    $region15: #{ada_layer_norm_zero.2} parent=1 // pred_check_branch
      %36 = sbr.rel (0) target = $region17
    $region16: #{ada_layer_norm_zero.2} parent=1 // pred_region
      _
    $region17: #{ada_layer_norm_zero.2} parent=1 // pred_fallthru
      _
    // Predicated region
    $region18: #{ada_layer_norm_zero.2} parent=1 // pred_check
      _
    $region19: #{ada_layer_norm_zero.2} parent=1 // pred_check_branch
      %38 = sbr.rel (0) target = $region21
    $region20: #{ada_layer_norm_zero.2} parent=1 // pred_region
      %40 = dma.done [#allocation5], 16
    $region21: #{ada_layer_norm_zero.2} parent=1 // pred_fallthru
      _
    // Predicated region
    $region22: #{ada_layer_norm_zero.2} parent=1 // pred_check
      _
    $region23: #{ada_layer_norm_zero.2} parent=1 // pred_check_branch
      %42 = sbr.rel (0) target = $region25
    $region24: #{ada_layer_norm_zero.2} parent=1 // pred_region
      %44 = dma.done [#allocation4], 1536
    $region25: #{ada_layer_norm_zero.2} parent=1 // pred_fallthru
      _
    %45 = sfence
    %s46 = sld [smem:[#allocation3]]
    %s47 = scalar_lea.vmem %s1, %s46
    %v48 = vld [vmem:[%s47] sm:$0x1]
    %vm49 = vcmask 253952
    %50 = vst.msk [vmem:[#allocation2] sm:$0x1] %vm49, %v48
    %s51 = sld [smem:[#allocation3 + $0x1]]
    %s52 = scalar_lea.vmem %s1, %s51
    %v53 = vld [vmem:[%s52] sm:$0x1]
    %54 = vst.msk [vmem:[#allocation2 + $0x1] sm:$0x1] %vm49, %v53
    %v55 = vld [vmem:[#allocation2] sm:$0x3]
    %v56 = vsub.f32 0.0, %v55
    %v57 = vmul.f32 %v56, 1.442695
    %v58 = vpow.pop %v57
    %v59 = vadd.f32 %v58, 1.0
    %v60 = vrcp.pop %v59
    %v61 = vmul.f32 %v59, %v60
    %v62 = vsub.f32 1.0, %v61
    %v63 = vmul.f32 %v60, %v62
    %v64 = vadd.f32 %v60, %v63
    %vm65 = vweird.f32 %v59
    %vm66 = vweird.f32 %v60
    %vm67 = vmor %vm65, %vm66
    %v68 = vsel %vm67, %v60, %v64
    %v69 = vand.u32 2147483647, %v59
    %vm70 = vcmp.eq.f32.partialorder %v69, 8.507059e+37
    %v71 = vand.u32 %v59, 2147483648
    %v72 = vor.u32 1.1754944e-38, %v71
    %v73 = vsel %vm70, %v72, %v68
    %v74 = vmul.f32 1.0, %v73
    %v75 = vmul.f32 %v55, %v74
    %v76 = vld [vmem:[#allocation6] sm:$0xff]
    %v77 = vld [vmem:[#allocation6 + $0x8] sm:$0xff]
    %v78 = vld [vmem:[#allocation6 + $0x10] sm:$0xff]
    %v79 = vld [vmem:[#allocation6 + $0x18] sm:$0xff]
    %v80 = vld [vmem:[#allocation6 + $0x20] sm:$0xff]
    %v81 = vld [vmem:[#allocation6 + $0x28] sm:$0xff]
    %v82 = vld [vmem:[#allocation6 + $0x30] sm:$0xff]
    %v83 = vld [vmem:[#allocation6 + $0x38] sm:$0xff]
    %v84 = vld [vmem:[#allocation6 + $0x40] sm:$0xff]
    %v85 = vld [vmem:[#allocation6 + $0x48] sm:$0xff]
    %v86 = vld [vmem:[#allocation6 + $0x50] sm:$0xff]
    %v87 = vld [vmem:[#allocation6 + $0x58] sm:$0xff]
    %v88 = vld [vmem:[%s3] sm:$0x7]
    %v90 = vperm.slane %v88, 0
    %v91 = vperm.slane %v88, 1
    %v92 = vperm.slane %v88, 2
    %vm96 = vcmask 261120
    %v98 = vsel %vm96, %v75, 0
    %100 = vmatpush.msra.mxu0 0.0
    %101 = vmatpush.msra.mxu0 0.0
    %102 = vmatpush.msra.mxu0 0.0
    %103 = vmatpush.msra.mxu0 0.0
    %104 = vmatpush.msra.mxu0 0.0
    %105 = vmatpush.msra.mxu0 0.0
    %106 = vmatpush.msra.mxu0 0.0
    %107 = vmatpush.msra.mxu0 0.0
    %108 = vmatpush.msra.mxu0 0.0
    %109 = vmatpush.msra.mxu0 0.0
    %110 = vmatpush.msra.mxu0 0.0
    %111 = vmatpush.msra.mxu0 0.0
    %112 = vmatpush.msra.mxu0 %v85
    %113 = vmatpush.msra.mxu0 %v82
    %114 = vmatpush.msra.mxu0 %v79
    %115 = vmatpush.msra.mxu0 %v76
    %116 = vmatmul.f32.gmra.mxu0 %v98
    %v117 = vpop.f32.mrf.mxu0
    %v118 = vadd.f32 %v90, %v117
    %119 = vdwg.mxu0
    %120 = vmatpush.msra.mxu0 0.0
    %121 = vmatpush.msra.mxu0 0.0
    %122 = vmatpush.msra.mxu0 0.0
    %123 = vmatpush.msra.mxu0 0.0
    %124 = vmatpush.msra.mxu0 0.0
    %125 = vmatpush.msra.mxu0 0.0
    %126 = vmatpush.msra.mxu0 0.0
    %127 = vmatpush.msra.mxu0 0.0
    %128 = vmatpush.msra.mxu0 0.0
    %129 = vmatpush.msra.mxu0 0.0
    %130 = vmatpush.msra.mxu0 0.0
    %131 = vmatpush.msra.mxu0 0.0
    %132 = vmatpush.msra.mxu0 %v86
    %133 = vmatpush.msra.mxu0 %v83
    %134 = vmatpush.msra.mxu0 %v80
    %135 = vmatpush.msra.mxu0 %v77
    %136 = vmatmul.f32.gmra.mxu0 %v98
    %v137 = vpop.f32.mrf.mxu0
    %v138 = vadd.f32 %v91, %v137
    %139 = vdwg.mxu0
    %140 = vmatpush.msra.mxu0 0.0
    %141 = vmatpush.msra.mxu0 0.0
    %142 = vmatpush.msra.mxu0 0.0
    %143 = vmatpush.msra.mxu0 0.0
    %144 = vmatpush.msra.mxu0 0.0
    %145 = vmatpush.msra.mxu0 0.0
    %146 = vmatpush.msra.mxu0 0.0
    %147 = vmatpush.msra.mxu0 0.0
    %148 = vmatpush.msra.mxu0 0.0
    %149 = vmatpush.msra.mxu0 0.0
    %150 = vmatpush.msra.mxu0 0.0
    %151 = vmatpush.msra.mxu0 0.0
    %152 = vmatpush.msra.mxu0 %v87
    %153 = vmatpush.msra.mxu0 %v84
    %154 = vmatpush.msra.mxu0 %v81
    %155 = vmatpush.msra.mxu0 %v78
    %156 = vmatmul.f32.gmra.mxu0 %v98
    %v157 = vpop.f32.mrf.mxu0
    %v158 = vadd.f32 %v92, %v157
    %159 = vdwg.mxu0
    %v163 = vrot.slane %v138, 6
    %v164 = vrot.slane %v158, 4
    %vm165 = vcmask 1041408
    %v166 = vsel %vm165, %v118, %v163
    %vm167 = vcmask 1043456
    %v168 = vsel %vm167, %v166, %v164
    %170 = vst [vmem:[%s4] sm:$0x3f] %v168
    // Predicated region
    $region26: #{ada_layer_norm_zero.2} parent=1 // pred_check
      _
    $region27: #{ada_layer_norm_zero.2} parent=1 // pred_check_branch
      %172 = sbr.rel (0) target = $region29
    $region28: #{ada_layer_norm_zero.2} parent=1 // pred_region
      _
    $region29: #{ada_layer_norm_zero.2} parent=1 // pred_fallthru
      _
    // Predicated region
    $region30: #{ada_layer_norm_zero.2} parent=1 // pred_check
      _
    $region31: #{ada_layer_norm_zero.2} parent=1 // pred_check_branch
      %174 = sbr.rel (0) target = $region33
    $region32: #{ada_layer_norm_zero.2} parent=1 // pred_region
      _
    $region33: #{ada_layer_norm_zero.2} parent=1 // pred_fallthru
      _
    %175 = vsyncpa [#allocation4], 1
    %176 = vsyncpa [#allocation5], 1

</llo_original>
